<compile_context>
chip_gen: v5e
topology: v5e:2x2
jax: 0.10.0
libtpu: 0.0.40
codegen_flags: <defaults>
</compile_context>

<pallas_src>
import functools

import jax
import jax.numpy as jnp
from jax.experimental import pallas as pl
from jax.experimental.pallas import tpu as pltpu


# ---------------------------------------------------------------------------
# Kernels
# ---------------------------------------------------------------------------

def _coldup_rowdup_kernel(x_ref, o_ref, *, sf, w, compute_dtype, exact_f32):
    """Large-map path.

    x_ref : (rb, W)        one row per input H-line of a plane
    o_ref : (rb, S*S*W)    all S*S*W output elements produced by that line

    Column duplication = one MXU matmul against a 0/1 matrix D (W, S*W) built
    in-kernel; row duplication = lane concatenation of the S identical rows.
    """
    sw = sf * w
    x = x_ref[...].astype(compute_dtype)

    # D[j, k] = 1 iff k // S == j  (built with iota/compare: no HBM read, no
    # double-buffered VMEM-resident copy; regen cost is ~W/(rb*S) of the matmul).
    jj = jax.lax.broadcasted_iota(jnp.int32, (w, sw), 0)
    kk = jax.lax.broadcasted_iota(jnp.int32, (w, sw), 1)
    sel = (kk >= jj * sf) & (kk < jj * sf + sf)
    d = jnp.where(sel, 1.0, 0.0).astype(compute_dtype)

    # TODO(synk): unlike a pure copy, the 0/1 matmul propagates NaN/Inf from any
    # element of an input row into every output of that row (0*Inf = NaN), and
    # the f32 HIGHEST path may flush denormals.
    y = jnp.dot(x, d, preferred_element_type=jnp.float32,
                precision=jax.lax.Precision.HIGHEST if exact_f32 else None)
    y = y.astype(o_ref.dtype)                       # cast BEFORE the S x expansion

    # The S output image rows coming from one input row are adjacent in the
    # (N*C*H, S*S*W) row-major layout -> row duplication is a lane concat and
    # the store is one dense lane slab.
    o_ref[...] = jnp.concatenate([y] * sf, axis=1)


def _packed_fused_kernel(x_ref, d_ref, o_ref, *, compute_dtype, exact_f32):
    """Small-map path: g source rows lane-packed per block row, block-diagonal
    fused row+col duplication matrix D (g*W, g*S*S*W) -> lane-dense stores."""
    x = x_ref[...].astype(compute_dtype)
    y = jnp.dot(x, d_ref[...], preferred_element_type=jnp.float32,
                precision=jax.lax.Precision.HIGHEST if exact_f32 else None)
    o_ref[...] = y.astype(o_ref.dtype)


# ---------------------------------------------------------------------------
# Host-side helpers
# ---------------------------------------------------------------------------

_FALLBACK_VMEM = 64 * 1024 * 1024      # v7x per-core capacity: safe lower bound


def _vmem_capacity_bytes():
    try:
        cap = int(pltpu.get_tpu_info().vmem_capacity_bytes)
        if cap > 0:
            return cap
    except Exception:
        pass
    return _FALLBACK_VMEM


def _vmem_limit(working_set, capacity):
    return int(min(0.9 * capacity, max(32 * 1024 * 1024,
                                       int(1.2 * working_set) + (8 << 20))))


def _sublane_multiple(dtype):
    return max(8, 32 // max(jnp.dtype(dtype).itemsize, 1))


def _compute_dtype(dtype):
    dtype = jnp.dtype(dtype)
    if dtype == jnp.dtype(jnp.bfloat16):
        return jnp.bfloat16, False
    if dtype.itemsize == 1:
        # (u)int8 / bool are exact in bf16 (|x| <= 255): one fast MXU pass.
        return jnp.bfloat16, False
    # TODO(synk): int32/int64/float64 values with |x| >= 2**24 lose precision
    # on this f32 route.
    return jnp.float32, True


def _pick_row_block(total_rows, per_row_bytes, fixed_bytes, budget_bytes, mult):
    """Rows per grid step from a per-generation VMEM budget (double-buffered
    in/out tiles + intermediates), rounded to the dtype's sublane packing."""
    avail = max(budget_bytes - fixed_bytes, per_row_bytes * mult)
    rb = max(avail // per_row_bytes, mult)
    if total_rows > 2048:
        # Keep >= ~8 grid steps (but never blocks < 1024 rows) on big problems
        # so both v7x TensorCores stay busy and the pipeline has work to overlap.
        rb = min(rb, max(1024, -(-total_rows // 8)))
    rb = min(rb, 1 << 14)
    if rb >= total_rows:
        return total_rows                          # full extent: always legal
    return max((rb // mult) * mult, mult)


def _fused_packed_dup_matrix(w, sf, g, dtype):
    """(g*W, g*S*S*W) block-diagonal 0/1 matrix: packed fused row+col dup."""
    wout = g * sf * sf * w
    k = jnp.arange(wout, dtype=jnp.int32)
    blk = k // (sf * sf * w)                       # which packed source row
    kin = k % (sf * sf * w)
    src = blk * w + (kin % (sf * w)) // sf         # source column in packed row
    j = jnp.arange(g * w, dtype=jnp.int32)
    return (j[:, None] == src[None, :]).astype(dtype)


# ---------------------------------------------------------------------------
# Entry point
# ---------------------------------------------------------------------------

def interpolate_nearest(x: jax.Array, scale_factor: int = 2) -> jax.Array:
    """Equivalent of F.interpolate(x, scale_factor=S, mode='nearest'), NCHW."""
    assert x.ndim == 4, "expected NCHW input"
    N, C, H, W = x.shape
    S = int(scale_factor)
    assert S >= 1, "scale_factor must be a positive integer"
    if S == 1:
        return x

    R = N * C * H
    cdt, exact_f32 = _compute_dtype(x.dtype)
    c_b = jnp.dtype(cdt).itemsize
    e_b = jnp.dtype(x.dtype).itemsize
    mult = _sublane_multiple(x.dtype)
    cap = _vmem_capacity_bytes()
    budget = int(0.45 * cap)                       # tile working-set target
    wout_row = S * S * W                           # output width per source row

    if wout_row < 128:
        # ---- small-map path: lane-pack g source rows, fused block-diag D ----
        g = min(-(-256 // wout_row), R)
        while g > 1 and R % g:
            g -= 1
        win, wout = g * W, g * wout_row
        rows = R // g
        d = _fused_packed_dup_matrix(W, S, g, cdt)

        per_row = 2 * win * e_b + 2 * wout * e_b + win * c_b + wout * 4
        fixed = 2 * win * wout * c_b               # D input (double-buffered, tiny)
        rb = _pick_row_block(rows, per_row, fixed, budget, mult)
        ws = fixed + per_row * rb

        out2 = pl.pallas_call(
            functools.partial(_packed_fused_kernel,
                              compute_dtype=cdt, exact_f32=exact_f32),
            out_shape=jax.ShapeDtypeStruct((rows, wout), x.dtype),
            grid_spec=pltpu.PrefetchScalarGridSpec(
                num_scalar_prefetch=0,
                grid=(pl.cdiv(rows, rb),),
                in_specs=[
                    pl.BlockSpec((rb, win), lambda i: (i, 0)),
                    pl.BlockSpec((win, wout), lambda i: (0, 0)),   # fetched once
                ],
                out_specs=pl.BlockSpec((rb, wout), lambda i: (i, 0)),
            ),
            compiler_params=pltpu.CompilerParams(
                dimension_semantics=("parallel",),
                vmem_limit_bytes=_vmem_limit(ws, cap),
            ),
        )(x.reshape(rows, win), d)
    else:
        # ---- large-map path: in-kernel column-only D + lane-concat row dup ---
        sw = S * W
        per_row = (2 * W * e_b + 2 * wout_row * e_b + W * c_b
                   + sw * 4 + wout_row * e_b)
        # In-kernel D plus its f32 build intermediate (single-buffered).
        # TODO(synk): extremely wide rows (W*S*W*c_b ~ VMEM) would need the
        # column dimension tiled as well; not done here.
        fixed = W * sw * (c_b + 4)
        rb = _pick_row_block(R, per_row, fixed, budget, mult)
        ws = fixed + per_row * rb

        out2 = pl.pallas_call(
            functools.partial(_coldup_rowdup_kernel, sf=S, w=W,
                              compute_dtype=cdt, exact_f32=exact_f32),
            out_shape=jax.ShapeDtypeStruct((R, wout_row), x.dtype),
            grid_spec=pltpu.PrefetchScalarGridSpec(
                num_scalar_prefetch=0,
                grid=(pl.cdiv(R, rb),),
                in_specs=[pl.BlockSpec((rb, W), lambda i: (i, 0))],
                out_specs=pl.BlockSpec((rb, wout_row), lambda i: (i, 0)),
            ),
            compiler_params=pltpu.CompilerParams(
                dimension_semantics=("parallel",),
                vmem_limit_bytes=_vmem_limit(ws, cap),
            ),
        )(x.reshape(R, W))

    # Free reshape: row-major (R/g, g*S*S*W) == (R, S, S*W) == (N, C, S*H, S*W).
    return out2.reshape(N, C, S * H, S * W)


class Interpolate:
    """Mirror of the PyTorch module (nearest mode, integer scale only)."""

    def __init__(self, size=None, scale_factor=None, mode='nearest', align_corners=None):
        assert mode == 'nearest', "only mode='nearest' is implemented"
        # TODO(synk): bilinear/bicubic modes, align_corners and non-integer
        # scale factors of F.interpolate are not implemented.
        self.size = size
        self.scale_factor = scale_factor

    def __call__(self, x):
        if self.scale_factor is not None:
            sf = self.scale_factor
            if isinstance(sf, (tuple, list)):
                assert len(set(sf)) == 1, "only equal H/W scale factors supported"
                sf = sf[0]
            s = int(sf)
            assert float(sf) == float(s), "only integer scale factors supported"
            return interpolate_nearest(x, s)
        assert self.size is not None, "need size or scale_factor"
        N, C, H, W = x.shape
        if isinstance(self.size, (tuple, list)):
            oh, ow = self.size
        else:
            oh = ow = int(self.size)
        assert oh % H == 0 and ow % W == 0 and oh // H == ow // W, \
            "only integer, equal H/W scale factors are supported"
        return interpolate_nearest(x, oh // H)


if __name__ == "__main__":
    key = jax.random.PRNGKey(0)

    # 1) f32, scale 2, small 16x16 maps -> packed/fused small-map path.
    N, C, H, W = 2, 4, 16, 16
    x = jax.random.normal(key, (N, C, H, W), dtype=jnp.float32)
    y = jax.block_until_ready(Interpolate(scale_factor=2)(x))
    ref = jnp.repeat(jnp.repeat(x, 2, axis=2), 2, axis=3)
    assert y.shape == (N, C, 2 * H, 2 * W), y.shape
    assert jnp.allclose(y, ref), "f32 small-map mismatch vs nearest reference"

    # 2) bf16, scale 3 -> large-map path (S*S*W >= 128), native bf16 MXU inputs.
    xb = x.astype(jnp.bfloat16)
    yb = jax.block_until_ready(interpolate_nearest(xb, 3))
    refb = jnp.repeat(jnp.repeat(xb, 3, axis=2), 3, axis=3)
    assert yb.shape == (N, C, 3 * H, 3 * W), yb.shape
    assert jnp.allclose(yb.astype(jnp.float32), refb.astype(jnp.float32)), \
        "bf16 mismatch vs nearest reference"

    # 3) f32, scale 2, wider maps -> large-map path with the f32 HIGHEST matmul.
    xw = jax.random.normal(jax.random.PRNGKey(1), (2, 4, 16, 64), dtype=jnp.float32)
    yw = jax.block_until_ready(interpolate_nearest(xw, 2))
    refw = jnp.repeat(jnp.repeat(xw, 2, axis=2), 2, axis=3)
    assert yw.shape == (2, 4, 32, 128), yw.shape
    assert jnp.allclose(yw, refw), "f32 large-map mismatch vs nearest reference"

    print("KERNEL_OK")
</pallas_src>

<mosaic_0001>
module attributes {stable_mosaic.version = 11 : i64} {
  func.func @_packed_fused_kernel(%arg0: i32, %arg1: memref<32x64xf32, #tpu.memory_space<vmem>>, %arg2: memref<64x256xf32, #tpu.memory_space<vmem>>, %arg3: memref<32x256xf32, #tpu.memory_space<vmem>>) attributes {dimension_semantics = [#tpu.dimension_semantics<parallel>], iteration_bounds = array<i64: 1>, scalar_prefetch = 0 : i64, scratch_operands = 0 : i64, tpu.core_type = #tpu.core_type<tc>, window_params = [{transform_indices = @transform_0, window_bounds = array<i64: 32, 64>}, {pipeline_mode = #tpu.pipeline_mode<synchronous>, transform_indices = @transform_1, window_bounds = array<i64: 64, 256>}, {transform_indices = @transform_2, window_bounds = array<i64: 32, 256>}]} {
    %c0 = arith.constant 0 : index
    %c0_0 = arith.constant 0 : index
    %0 = vector.load %arg1[%c0, %c0_0] : memref<32x64xf32, #tpu.memory_space<vmem>>, vector<32x64xf32>
    %c0_1 = arith.constant 0 : index
    %c0_2 = arith.constant 0 : index
    %1 = vector.load %arg2[%c0_1, %c0_2] : memref<64x256xf32, #tpu.memory_space<vmem>>, vector<64x256xf32>
    %cst = arith.constant dense<0.000000e+00> : vector<32x256xf32>
    %2 = tpu.matmul %0, %1, %cst {dimension_numbers = #tpu.dot_dimension_numbers<[1], [0], [0], [1], [0, 0, 1, 1], [], []>, precision = #tpu.contract_precision<fp32>} : vector<32x64xf32>, vector<64x256xf32>, vector<32x256xf32> -> vector<32x256xf32>
    %c0_3 = arith.constant 0 : index
    %c0_4 = arith.constant 0 : index
    %3 = vector.load %arg3[%c0_3, %c0_4] : memref<32x256xf32, #tpu.memory_space<vmem>>, vector<32x256xf32>
    tpu.vector_store %arg3[%c0_3, %c0_4], %2 {strides = array<i32>} : memref<32x256xf32, #tpu.memory_space<vmem>>, vector<32x256xf32>,
    return
  }
  func.func @transform_0(%arg0: i32) -> (i32, i32) {
    %c0_i32 = arith.constant 0 : i32
    %c0_i32_0 = arith.constant 0 : i32
    return %arg0, %c0_i32 : i32, i32
  }
  func.func @transform_1(%arg0: i32) -> (i32, i32) {
    %c0_i32 = arith.constant 0 : i32
    %c0_i32_0 = arith.constant 0 : i32
    %c0_i32_1 = arith.constant 0 : i32
    return %c0_i32, %c0_i32_0 : i32, i32
  }
  func.func @transform_2(%arg0: i32) -> (i32, i32) {
    %c0_i32 = arith.constant 0 : i32
    %c0_i32_0 = arith.constant 0 : i32
    return %arg0, %c0_i32 : i32, i32
  }
}

</mosaic_0001>

<llo_original>
// kernel: tpu_custom_call.1
$region0: #{tpu_custom_call.1}
  #allocation0 [shape = 'u32[]', space=smem, size = 0x4, offset = 0x4, fixed_abs, tag = 'smem constant byte address 0x4 - core index']
  #allocation1 [shape = 'u32[72,128]{1,0:T(1,128)}', space=vmem, size = 0x9000, scoped, tag = 'internal scratch']
  %s0 = inlined_call_operand.hbm [shape: f32[32,64], index: 0, kind: input, shape index: {}]
  %s1 = inlined_call_operand.hbm [shape: f32[64,256], index: 1, kind: input, shape index: {}]
  %s2 = inlined_call_operand.hbm [shape: f32[32,256], index: 2, kind: output, shape index: {}]
  %s3 = sld [smem:[#allocation0]]
  $region26: #{tpu_custom_call.1} parent=0
    _
  %s5 = ssub.s32 1, %s3
  %s6 = scalar_select 0, %s5, %s3
  $region1: #{tpu_custom_call.1} parent=0
    #allocation2 [shape = 'u8[16384]{0}', space=vmem, size = 0x4000, scoped, tag = 'input window, operand 0, single buffered']
    #allocation3 [shape = 's32[1]{0}', space=sflag, size = 0x4, scoped, tag = 'scoped memory for tpu_custom_call.1']
    #allocation4 [shape = 's32[1]{0}', space=sflag, size = 0x4, scoped, tag = 'scoped memory for tpu_custom_call.1']
    #allocation5 [shape = 'u8[65536]{0}', space=vmem, size = 0x10000, scoped, tag = 'input window, operand 1, single buffered']
    #allocation6 [shape = 's32[1]{0}', space=sflag, size = 0x4, scoped, tag = 'scoped memory for tpu_custom_call.1']
    #allocation7 [shape = 'u8[32768]{0}', space=vmem, size = 0x8000, scoped, tag = 'output window, operand 0, single buffered']
    %7 = vsyncpa [#allocation3], 0
    %8 = vsyncpa [#allocation6], 0
    %9 = vsyncpa [#allocation4], 0
    // Predicated region
    $region2: #{tpu_custom_call.1} parent=1 // pred_check
      _
    $region3: #{tpu_custom_call.1} parent=1 // pred_check_branch
      %11 = sbr.rel (0) target = $region5
    $region4: #{tpu_custom_call.1} parent=1 // pred_region
      %13 = vsyncadd [#allocation3], 0
      %s14 = sshll.u32 %s0, 4
      %s15 = int_to_ptr.hbm [resolvable:$true] %s14
      %s16 = sshll.u32 [#allocation2], 4
      %s17 = int_to_ptr.vmem [resolvable:$true] %s16
      %22 = dma.hbm_to_vmem [thread:$0]  %s15, 512, %s17, [#allocation3], 128, 128, 8
    $region5: #{tpu_custom_call.1} parent=1 // pred_fallthru
      _
    // Predicated region
    $region6: #{tpu_custom_call.1} parent=1 // pred_check
      _
    $region7: #{tpu_custom_call.1} parent=1 // pred_check_branch
      %24 = sbr.rel (0) target = $region9
    $region8: #{tpu_custom_call.1} parent=1 // pred_region
      %26 = vsyncadd [#allocation6], 0
      %s27 = sshll.u32 %s1, 4
      %s28 = int_to_ptr.hbm [resolvable:$true] %s27
      %s29 = sshll.u32 [#allocation5], 4
      %s30 = int_to_ptr.vmem [resolvable:$true] %s29
      %35 = dma.hbm_to_vmem [thread:$0]  %s28, 2048, %s30, [#allocation6], 256, 256, 16
    $region9: #{tpu_custom_call.1} parent=1 // pred_fallthru
      _
    // Predicated region
    $region10: #{tpu_custom_call.1} parent=1 // pred_check
      _
    $region11: #{tpu_custom_call.1} parent=1 // pred_check_branch
      %37 = sbr.rel (0) target = $region13
    $region12: #{tpu_custom_call.1} parent=1 // pred_region
      %39 = dma.done [#allocation3], 512
    $region13: #{tpu_custom_call.1} parent=1 // pred_fallthru
      _
    // Predicated region
    $region14: #{tpu_custom_call.1} parent=1 // pred_check
      _
    $region15: #{tpu_custom_call.1} parent=1 // pred_check_branch
      %41 = sbr.rel (0) target = $region17
    $region16: #{tpu_custom_call.1} parent=1 // pred_region
      %43 = dma.done [#allocation6], 2048
    $region17: #{tpu_custom_call.1} parent=1 // pred_fallthru
      _
    %v44 = vld [vmem:[#allocation2] sm:$0xff]
    %v45 = vld [vmem:[#allocation2 + $0x8] sm:$0xff]
    %v46 = vld [vmem:[#allocation2 + $0x10] sm:$0xff]
    %v47 = vld [vmem:[#allocation2 + $0x18] sm:$0xff]
    %v48 = vld [vmem:[#allocation5] sm:$0xff]
    %v49 = vld [vmem:[#allocation5 + $0x8] sm:$0xff]
    %v50 = vld [vmem:[#allocation5 + $0x10] sm:$0xff]
    %v51 = vld [vmem:[#allocation5 + $0x18] sm:$0xff]
    %v52 = vld [vmem:[#allocation5 + $0x20] sm:$0xff]
    %v53 = vld [vmem:[#allocation5 + $0x28] sm:$0xff]
    %v54 = vld [vmem:[#allocation5 + $0x30] sm:$0xff]
    %v55 = vld [vmem:[#allocation5 + $0x38] sm:$0xff]
    %v56 = vld [vmem:[#allocation5 + $0x40] sm:$0xff]
    %v57 = vld [vmem:[#allocation5 + $0x48] sm:$0xff]
    %v58 = vld [vmem:[#allocation5 + $0x50] sm:$0xff]
    %v59 = vld [vmem:[#allocation5 + $0x58] sm:$0xff]
    %v60 = vld [vmem:[#allocation5 + $0x60] sm:$0xff]
    %v61 = vld [vmem:[#allocation5 + $0x68] sm:$0xff]
    %v62 = vld [vmem:[#allocation5 + $0x70] sm:$0xff]
    %v63 = vld [vmem:[#allocation5 + $0x78] sm:$0xff]
    %vm64 = vcmask 523264
    %v66 = vsel %vm64, %v44, 0
    %v69 = vsel %vm64, %v45, 0
    %v72 = vsel %vm64, %v46, 0
    %v75 = vsel %vm64, %v47, 0
    %77 = vmatpush.msra.mxu0 0.0
    %78 = vmatpush.msra.mxu0 0.0
    %79 = vmatpush.msra.mxu0 0.0
    %80 = vmatpush.msra.mxu0 0.0
    %81 = vmatpush.msra.mxu0 0.0
    %82 = vmatpush.msra.mxu0 0.0
    %83 = vmatpush.msra.mxu0 0.0
    %84 = vmatpush.msra.mxu0 0.0
    %v85 = vand.u32 %v62, 4294901760
    %86 = vmatpush.msra.mxu0 %v85
    %v87 = vand.u32 %v60, 4294901760
    %88 = vmatpush.msra.mxu0 %v87
    %v89 = vand.u32 %v58, 4294901760
    %90 = vmatpush.msra.mxu0 %v89
    %v91 = vand.u32 %v56, 4294901760
    %92 = vmatpush.msra.mxu0 %v91
    %v93 = vand.u32 %v54, 4294901760
    %94 = vmatpush.msra.mxu0 %v93
    %v95 = vand.u32 %v52, 4294901760
    %96 = vmatpush.msra.mxu0 %v95
    %v97 = vand.u32 %v50, 4294901760
    %98 = vmatpush.msra.mxu0 %v97
    %v99 = vand.u32 %v48, 4294901760
    %100 = vmatpush.msra.mxu0 %v99
    %v101 = vand.u32 %v66, 4294901760
    %v102 = vsub.f32 %v66, %v101
    %v103 = vand.u32 %v102, 4294901760
    %v104 = vsub.f32 %v102, %v103
    %v105 = vand.u32 %v104, 4294901760
    %106 = vmatmul.f32.gmra.mxu0 %v105
    %v107 = vpop.f32.mrf.mxu0
    %v108 = vadd.f32 0.0, %v107
    %v109 = vand.u32 %v69, 4294901760
    %v110 = vsub.f32 %v69, %v109
    %v111 = vand.u32 %v110, 4294901760
    %v112 = vsub.f32 %v110, %v111
    %v113 = vand.u32 %v112, 4294901760
    %114 = vmatmul.f32.gmra.mxu0 %v113
    %v115 = vpop.f32.mrf.mxu0
    %v116 = vadd.f32 0.0, %v115
    %v117 = vand.u32 %v72, 4294901760
    %v118 = vsub.f32 %v72, %v117
    %v119 = vand.u32 %v118, 4294901760
    %v120 = vsub.f32 %v118, %v119
    %v121 = vand.u32 %v120, 4294901760
    %122 = vmatmul.f32.gmra.mxu0 %v121
    %v123 = vpop.f32.mrf.mxu0
    %v124 = vadd.f32 0.0, %v123
    %v125 = vand.u32 %v75, 4294901760
    %v126 = vsub.f32 %v75, %v125
    %v127 = vand.u32 %v126, 4294901760
    %v128 = vsub.f32 %v126, %v127
    %v129 = vand.u32 %v128, 4294901760
    %130 = vmatmul.f32.gmra.mxu0 %v129
    %v131 = vpop.f32.mrf.mxu0
    %v132 = vadd.f32 0.0, %v131
    %133 = vdwg.mxu0
    %134 = vmatpush.msra.mxu0 0.0
    %135 = vmatpush.msra.mxu0 0.0
    %136 = vmatpush.msra.mxu0 0.0
    %137 = vmatpush.msra.mxu0 0.0
    %138 = vmatpush.msra.mxu0 0.0
    %139 = vmatpush.msra.mxu0 0.0
    %140 = vmatpush.msra.mxu0 0.0
    %141 = vmatpush.msra.mxu0 0.0
    %v142 = vand.u32 %v62, 4294901760
    %v143 = vsub.f32 %v62, %v142
    %v144 = vand.u32 %v143, 4294901760
    %v145 = vsub.f32 %v143, %v144
    %v146 = vand.u32 %v145, 4294901760
    %147 = vmatpush.msra.mxu0 %v146
    %v148 = vand.u32 %v60, 4294901760
    %v149 = vsub.f32 %v60, %v148
    %v150 = vand.u32 %v149, 4294901760
    %v151 = vsub.f32 %v149, %v150
    %v152 = vand.u32 %v151, 4294901760
    %153 = vmatpush.msra.mxu0 %v152
    %v154 = vand.u32 %v58, 4294901760
    %v155 = vsub.f32 %v58, %v154
    %v156 = vand.u32 %v155, 4294901760
    %v157 = vsub.f32 %v155, %v156
    %v158 = vand.u32 %v157, 4294901760
    %159 = vmatpush.msra.mxu0 %v158
    %v160 = vand.u32 %v56, 4294901760
    %v161 = vsub.f32 %v56, %v160
    %v162 = vand.u32 %v161, 4294901760
    %v163 = vsub.f32 %v161, %v162
    %v164 = vand.u32 %v163, 4294901760
    %165 = vmatpush.msra.mxu0 %v164
    %v166 = vand.u32 %v54, 4294901760
    %v167 = vsub.f32 %v54, %v166
    %v168 = vand.u32 %v167, 4294901760
    %v169 = vsub.f32 %v167, %v168
    %v170 = vand.u32 %v169, 4294901760
    %171 = vmatpush.msra.mxu0 %v170
    %v172 = vand.u32 %v52, 4294901760
    %v173 = vsub.f32 %v52, %v172
    %v174 = vand.u32 %v173, 4294901760
    %v175 = vsub.f32 %v173, %v174
    %v176 = vand.u32 %v175, 4294901760
    %177 = vmatpush.msra.mxu0 %v176
    %v178 = vand.u32 %v50, 4294901760
    %v179 = vsub.f32 %v50, %v178
    %v180 = vand.u32 %v179, 4294901760
    %v181 = vsub.f32 %v179, %v180
    %v182 = vand.u32 %v181, 4294901760
    %183 = vmatpush.msra.mxu0 %v182
    %v184 = vand.u32 %v48, 4294901760
    %v185 = vsub.f32 %v48, %v184
    %v186 = vand.u32 %v185, 4294901760
    %v187 = vsub.f32 %v185, %v186
    %v188 = vand.u32 %v187, 4294901760
    %189 = vmatpush.msra.mxu0 %v188
    %v190 = vand.u32 %v66, 4294901760
    %191 = vmatmul.f32.gmra.mxu0 %v190
    %v192 = vpop.f32.mrf.mxu0
    %v193 = vadd.f32 %v108, %v192
    %v194 = vand.u32 %v69, 4294901760
    %195 = vmatmul.f32.gmra.mxu0 %v194
    %v196 = vpop.f32.mrf.mxu0
    %v197 = vadd.f32 %v116, %v196
    %v198 = vand.u32 %v72, 4294901760
    %199 = vmatmul.f32.gmra.mxu0 %v198
    %v200 = vpop.f32.mrf.mxu0
    %v201 = vadd.f32 %v124, %v200
    %v202 = vand.u32 %v75, 4294901760
    %203 = vmatmul.f32.gmra.mxu0 %v202
    %v204 = vpop.f32.mrf.mxu0
    %v205 = vadd.f32 %v132, %v204
    %206 = vdwg.mxu0
    %207 = vmatpush.msra.mxu0 0.0
    %208 = vmatpush.msra.mxu0 0.0
    %209 = vmatpush.msra.mxu0 0.0
    %210 = vmatpush.msra.mxu0 0.0
    %211 = vmatpush.msra.mxu0 0.0
    %212 = vmatpush.msra.mxu0 0.0
    %213 = vmatpush.msra.mxu0 0.0
    %214 = vmatpush.msra.mxu0 0.0
    %v215 = vand.u32 %v62, 4294901760
    %v216 = vsub.f32 %v62, %v215
    %217 = vmatpush.msra.mxu0 %v216
    %v218 = vand.u32 %v60, 4294901760
    %v219 = vsub.f32 %v60, %v218
    %220 = vmatpush.msra.mxu0 %v219
    %v221 = vand.u32 %v58, 4294901760
    %v222 = vsub.f32 %v58, %v221
    %223 = vmatpush.msra.mxu0 %v222
    %v224 = vand.u32 %v56, 4294901760
    %v225 = vsub.f32 %v56, %v224
    %226 = vmatpush.msra.mxu0 %v225
    %v227 = vand.u32 %v54, 4294901760
    %v228 = vsub.f32 %v54, %v227
    %229 = vmatpush.msra.mxu0 %v228
    %v230 = vand.u32 %v52, 4294901760
    %v231 = vsub.f32 %v52, %v230
    %232 = vmatpush.msra.mxu0 %v231
    %v233 = vand.u32 %v50, 4294901760
    %v234 = vsub.f32 %v50, %v233
    %235 = vmatpush.msra.mxu0 %v234
    %v236 = vand.u32 %v48, 4294901760
    %v237 = vsub.f32 %v48, %v236
    %238 = vmatpush.msra.mxu0 %v237
    %v239 = vand.u32 %v66, 4294901760
    %v240 = vsub.f32 %v66, %v239
    %241 = vmatmul.f32.gmra.mxu0 %v240
    %v242 = vpop.f32.mrf.mxu0
    %v243 = vadd.f32 %v193, %v242
    %v244 = vand.u32 %v69, 4294901760
    %v245 = vsub.f32 %v69, %v244
    %246 = vmatmul.f32.gmra.mxu0 %v245
    %v247 = vpop.f32.mrf.mxu0
    %v248 = vadd.f32 %v197, %v247
    %v249 = vand.u32 %v72, 4294901760
    %v250 = vsub.f32 %v72, %v249
    %251 = vmatmul.f32.gmra.mxu0 %v250
    %v252 = vpop.f32.mrf.mxu0
    %v253 = vadd.f32 %v201, %v252
    %v254 = vand.u32 %v75, 4294901760
    %v255 = vsub.f32 %v75, %v254
    %256 = vmatmul.f32.gmra.mxu0 %v255
    %v257 = vpop.f32.mrf.mxu0
    %v258 = vadd.f32 %v205, %v257
    %259 = vdwg.mxu0
    %260 = vmatpush.msra.mxu0 0.0
    %261 = vmatpush.msra.mxu0 0.0
    %262 = vmatpush.msra.mxu0 0.0
    %263 = vmatpush.msra.mxu0 0.0
    %264 = vmatpush.msra.mxu0 0.0
    %265 = vmatpush.msra.mxu0 0.0
    %266 = vmatpush.msra.mxu0 0.0
    %267 = vmatpush.msra.mxu0 0.0
    %v268 = vand.u32 %v62, 4294901760
    %269 = vmatpush.msra.mxu0 %v268
    %v270 = vand.u32 %v60, 4294901760
    %271 = vmatpush.msra.mxu0 %v270
    %v272 = vand.u32 %v58, 4294901760
    %273 = vmatpush.msra.mxu0 %v272
    %v274 = vand.u32 %v56, 4294901760
    %275 = vmatpush.msra.mxu0 %v274
    %v276 = vand.u32 %v54, 4294901760
    %277 = vmatpush.msra.mxu0 %v276
    %v278 = vand.u32 %v52, 4294901760
    %279 = vmatpush.msra.mxu0 %v278
    %v280 = vand.u32 %v50, 4294901760
    %281 = vmatpush.msra.mxu0 %v280
    %v282 = vand.u32 %v48, 4294901760
    %283 = vmatpush.msra.mxu0 %v282
    %v284 = vand.u32 %v66, 4294901760
    %v285 = vsub.f32 %v66, %v284
    %v286 = vand.u32 %v285, 4294901760
    %287 = vmatmul.f32.gmra.mxu0 %v286
    %v288 = vpop.f32.mrf.mxu0
    %v289 = vadd.f32 %v243, %v288
    %v290 = vand.u32 %v69, 4294901760
    %v291 = vsub.f32 %v69, %v290
    %v292 = vand.u32 %v291, 4294901760
    %293 = vmatmul.f32.gmra.mxu0 %v292
    %v294 = vpop.f32.mrf.mxu0
    %v295 = vadd.f32 %v248, %v294
    %v296 = vand.u32 %v72, 4294901760
    %v297 = vsub.f32 %v72, %v296
    %v298 = vand.u32 %v297, 4294901760
    %299 = vmatmul.f32.gmra.mxu0 %v298
    %v300 = vpop.f32.mrf.mxu0
    %v301 = vadd.f32 %v253, %v300
    %v302 = vand.u32 %v75, 4294901760
    %v303 = vsub.f32 %v75, %v302
    %v304 = vand.u32 %v303, 4294901760
    %305 = vmatmul.f32.gmra.mxu0 %v304
    %v306 = vpop.f32.mrf.mxu0
    %v307 = vadd.f32 %v258, %v306
    %308 = vdwg.mxu0
    %309 = vmatpush.msra.mxu0 0.0
    %310 = vmatpush.msra.mxu0 0.0
    %311 = vmatpush.msra.mxu0 0.0
    %312 = vmatpush.msra.mxu0 0.0
    %313 = vmatpush.msra.mxu0 0.0
    %314 = vmatpush.msra.mxu0 0.0
    %315 = vmatpush.msra.mxu0 0.0
    %316 = vmatpush.msra.mxu0 0.0
    %v317 = vand.u32 %v62, 4294901760
    %v318 = vsub.f32 %v62, %v317
    %v319 = vand.u32 %v318, 4294901760
    %320 = vmatpush.msra.mxu0 %v319
    %v321 = vand.u32 %v60, 4294901760
    %v322 = vsub.f32 %v60, %v321
    %v323 = vand.u32 %v322, 4294901760
    %324 = vmatpush.msra.mxu0 %v323
    %v325 = vand.u32 %v58, 4294901760
    %v326 = vsub.f32 %v58, %v325
    %v327 = vand.u32 %v326, 4294901760
    %328 = vmatpush.msra.mxu0 %v327
    %v329 = vand.u32 %v56, 4294901760
    %v330 = vsub.f32 %v56, %v329
    %v331 = vand.u32 %v330, 4294901760
    %332 = vmatpush.msra.mxu0 %v331
    %v333 = vand.u32 %v54, 4294901760
    %v334 = vsub.f32 %v54, %v333
    %v335 = vand.u32 %v334, 4294901760
    %336 = vmatpush.msra.mxu0 %v335
    %v337 = vand.u32 %v52, 4294901760
    %v338 = vsub.f32 %v52, %v337
    %v339 = vand.u32 %v338, 4294901760
    %340 = vmatpush.msra.mxu0 %v339
    %v341 = vand.u32 %v50, 4294901760
    %v342 = vsub.f32 %v50, %v341
    %v343 = vand.u32 %v342, 4294901760
    %344 = vmatpush.msra.mxu0 %v343
    %v345 = vand.u32 %v48, 4294901760
    %v346 = vsub.f32 %v48, %v345
    %v347 = vand.u32 %v346, 4294901760
    %348 = vmatpush.msra.mxu0 %v347
    %v349 = vand.u32 %v66, 4294901760
    %350 = vmatmul.f32.gmra.mxu0 %v349
    %v351 = vpop.f32.mrf.mxu0
    %v352 = vadd.f32 %v289, %v351
    %v353 = vand.u32 %v69, 4294901760
    %354 = vmatmul.f32.gmra.mxu0 %v353
    %v355 = vpop.f32.mrf.mxu0
    %v356 = vadd.f32 %v295, %v355
    %v357 = vand.u32 %v72, 4294901760
    %358 = vmatmul.f32.gmra.mxu0 %v357
    %v359 = vpop.f32.mrf.mxu0
    %v360 = vadd.f32 %v301, %v359
    %v361 = vand.u32 %v75, 4294901760
    %362 = vmatmul.f32.gmra.mxu0 %v361
    %v363 = vpop.f32.mrf.mxu0
    %v364 = vadd.f32 %v307, %v363
    %365 = vdwg.mxu0
    %366 = vmatpush.msra.mxu0 0.0
    %367 = vmatpush.msra.mxu0 0.0
    %368 = vmatpush.msra.mxu0 0.0
    %369 = vmatpush.msra.mxu0 0.0
    %370 = vmatpush.msra.mxu0 0.0
    %371 = vmatpush.msra.mxu0 0.0
    %372 = vmatpush.msra.mxu0 0.0
    %373 = vmatpush.msra.mxu0 0.0
    %v374 = vand.u32 %v62, 4294901760
    %375 = vmatpush.msra.mxu0 %v374
    %v376 = vand.u32 %v60, 4294901760
    %377 = vmatpush.msra.mxu0 %v376
    %v378 = vand.u32 %v58, 4294901760
    %379 = vmatpush.msra.mxu0 %v378
    %v380 = vand.u32 %v56, 4294901760
    %381 = vmatpush.msra.mxu0 %v380
    %v382 = vand.u32 %v54, 4294901760
    %383 = vmatpush.msra.mxu0 %v382
    %v384 = vand.u32 %v52, 4294901760
    %385 = vmatpush.msra.mxu0 %v384
    %v386 = vand.u32 %v50, 4294901760
    %387 = vmatpush.msra.mxu0 %v386
    %v388 = vand.u32 %v48, 4294901760
    %389 = vmatpush.msra.mxu0 %v388
    %v390 = vand.u32 %v66, 4294901760
    %391 = vmatmul.f32.gmra.mxu0 %v390
    %v392 = vpop.f32.mrf.mxu0
    %v393 = vadd.f32 %v352, %v392
    %v394 = vand.u32 %v69, 4294901760
    %395 = vmatmul.f32.gmra.mxu0 %v394
    %v396 = vpop.f32.mrf.mxu0
    %v397 = vadd.f32 %v356, %v396
    %v398 = vand.u32 %v72, 4294901760
    %399 = vmatmul.f32.gmra.mxu0 %v398
    %v400 = vpop.f32.mrf.mxu0
    %v401 = vadd.f32 %v360, %v400
    %v402 = vand.u32 %v75, 4294901760
    %403 = vmatmul.f32.gmra.mxu0 %v402
    %v404 = vpop.f32.mrf.mxu0
    %v405 = vadd.f32 %v364, %v404
    %406 = vdwg.mxu0
    %407 = vmatpush.msra.mxu0 0.0
    %408 = vmatpush.msra.mxu0 0.0
    %409 = vmatpush.msra.mxu0 0.0
    %410 = vmatpush.msra.mxu0 0.0
    %411 = vmatpush.msra.mxu0 0.0
    %412 = vmatpush.msra.mxu0 0.0
    %413 = vmatpush.msra.mxu0 0.0
    %414 = vmatpush.msra.mxu0 0.0
    %v415 = vand.u32 %v63, 4294901760
    %416 = vmatpush.msra.mxu0 %v415
    %v417 = vand.u32 %v61, 4294901760
    %418 = vmatpush.msra.mxu0 %v417
    %v419 = vand.u32 %v59, 4294901760
    %420 = vmatpush.msra.mxu0 %v419
    %v421 = vand.u32 %v57, 4294901760
    %422 = vmatpush.msra.mxu0 %v421
    %v423 = vand.u32 %v55, 4294901760
    %424 = vmatpush.msra.mxu0 %v423
    %v425 = vand.u32 %v53, 4294901760
    %426 = vmatpush.msra.mxu0 %v425
    %v427 = vand.u32 %v51, 4294901760
    %428 = vmatpush.msra.mxu0 %v427
    %v429 = vand.u32 %v49, 4294901760
    %430 = vmatpush.msra.mxu0 %v429
    %v431 = vand.u32 %v66, 4294901760
    %v432 = vsub.f32 %v66, %v431
    %v433 = vand.u32 %v432, 4294901760
    %v434 = vsub.f32 %v432, %v433
    %v435 = vand.u32 %v434, 4294901760
    %436 = vmatmul.f32.gmra.mxu0 %v435
    %v437 = vpop.f32.mrf.mxu0
    %v438 = vadd.f32 0.0, %v437
    %v439 = vand.u32 %v69, 4294901760
    %v440 = vsub.f32 %v69, %v439
    %v441 = vand.u32 %v440, 4294901760
    %v442 = vsub.f32 %v440, %v441
    %v443 = vand.u32 %v442, 4294901760
    %444 = vmatmul.f32.gmra.mxu0 %v443
    %v445 = vpop.f32.mrf.mxu0
    %v446 = vadd.f32 0.0, %v445
    %v447 = vand.u32 %v72, 4294901760
    %v448 = vsub.f32 %v72, %v447
    %v449 = vand.u32 %v448, 4294901760
    %v450 = vsub.f32 %v448, %v449
    %v451 = vand.u32 %v450, 4294901760
    %452 = vmatmul.f32.gmra.mxu0 %v451
    %v453 = vpop.f32.mrf.mxu0
    %v454 = vadd.f32 0.0, %v453
    %v455 = vand.u32 %v75, 4294901760
    %v456 = vsub.f32 %v75, %v455
    %v457 = vand.u32 %v456, 4294901760
    %v458 = vsub.f32 %v456, %v457
    %v459 = vand.u32 %v458, 4294901760
    %460 = vmatmul.f32.gmra.mxu0 %v459
    %v461 = vpop.f32.mrf.mxu0
    %v462 = vadd.f32 0.0, %v461
    %463 = vdwg.mxu0
    %464 = vmatpush.msra.mxu0 0.0
    %465 = vmatpush.msra.mxu0 0.0
    %466 = vmatpush.msra.mxu0 0.0
    %467 = vmatpush.msra.mxu0 0.0
    %468 = vmatpush.msra.mxu0 0.0
    %469 = vmatpush.msra.mxu0 0.0
    %470 = vmatpush.msra.mxu0 0.0
    %471 = vmatpush.msra.mxu0 0.0
    %v472 = vand.u32 %v63, 4294901760
    %v473 = vsub.f32 %v63, %v472
    %v474 = vand.u32 %v473, 4294901760
    %v475 = vsub.f32 %v473, %v474
    %v476 = vand.u32 %v475, 4294901760
    %477 = vmatpush.msra.mxu0 %v476
    %v478 = vand.u32 %v61, 4294901760
    %v479 = vsub.f32 %v61, %v478
    %v480 = vand.u32 %v479, 4294901760
    %v481 = vsub.f32 %v479, %v480
    %v482 = vand.u32 %v481, 4294901760
    %483 = vmatpush.msra.mxu0 %v482
    %v484 = vand.u32 %v59, 4294901760
    %v485 = vsub.f32 %v59, %v484
    %v486 = vand.u32 %v485, 4294901760
    %v487 = vsub.f32 %v485, %v486
    %v488 = vand.u32 %v487, 4294901760
    %489 = vmatpush.msra.mxu0 %v488
    %v490 = vand.u32 %v57, 4294901760
    %v491 = vsub.f32 %v57, %v490
    %v492 = vand.u32 %v491, 4294901760
    %v493 = vsub.f32 %v491, %v492
    %v494 = vand.u32 %v493, 4294901760
    %495 = vmatpush.msra.mxu0 %v494
    %v496 = vand.u32 %v55, 4294901760
    %v497 = vsub.f32 %v55, %v496
    %v498 = vand.u32 %v497, 4294901760
    %v499 = vsub.f32 %v497, %v498
    %v500 = vand.u32 %v499, 4294901760
    %501 = vmatpush.msra.mxu0 %v500
    %v502 = vand.u32 %v53, 4294901760
    %v503 = vsub.f32 %v53, %v502
    %v504 = vand.u32 %v503, 4294901760
    %v505 = vsub.f32 %v503, %v504
    %v506 = vand.u32 %v505, 4294901760
    %507 = vmatpush.msra.mxu0 %v506
    %v508 = vand.u32 %v51, 4294901760
    %v509 = vsub.f32 %v51, %v508
    %v510 = vand.u32 %v509, 4294901760
    %v511 = vsub.f32 %v509, %v510
    %v512 = vand.u32 %v511, 4294901760
    %513 = vmatpush.msra.mxu0 %v512
    %v514 = vand.u32 %v49, 4294901760
    %v515 = vsub.f32 %v49, %v514
    %v516 = vand.u32 %v515, 4294901760
    %v517 = vsub.f32 %v515, %v516
    %v518 = vand.u32 %v517, 4294901760
    %519 = vmatpush.msra.mxu0 %v518
    %v520 = vand.u32 %v66, 4294901760
    %521 = vmatmul.f32.gmra.mxu0 %v520
    %v522 = vpop.f32.mrf.mxu0
    %v523 = vadd.f32 %v438, %v522
    %v524 = vand.u32 %v69, 4294901760
    %525 = vmatmul.f32.gmra.mxu0 %v524
    %v526 = vpop.f32.mrf.mxu0
    %v527 = vadd.f32 %v446, %v526
    %v528 = vand.u32 %v72, 4294901760
    %529 = vmatmul.f32.gmra.mxu0 %v528
    %v530 = vpop.f32.mrf.mxu0
    %v531 = vadd.f32 %v454, %v530
    %v532 = vand.u32 %v75, 4294901760
    %533 = vmatmul.f32.gmra.mxu0 %v532
    %v534 = vpop.f32.mrf.mxu0
    %v535 = vadd.f32 %v462, %v534
    %536 = vdwg.mxu0
    %537 = vmatpush.msra.mxu0 0.0
    %538 = vmatpush.msra.mxu0 0.0
    %539 = vmatpush.msra.mxu0 0.0
    %540 = vmatpush.msra.mxu0 0.0
    %541 = vmatpush.msra.mxu0 0.0
    %542 = vmatpush.msra.mxu0 0.0
    %543 = vmatpush.msra.mxu0 0.0
    %544 = vmatpush.msra.mxu0 0.0
    %v545 = vand.u32 %v63, 4294901760
    %v546 = vsub.f32 %v63, %v545
    %547 = vmatpush.msra.mxu0 %v546
    %v548 = vand.u32 %v61, 4294901760
    %v549 = vsub.f32 %v61, %v548
    %550 = vmatpush.msra.mxu0 %v549
    %v551 = vand.u32 %v59, 4294901760
    %v552 = vsub.f32 %v59, %v551
    %553 = vmatpush.msra.mxu0 %v552
    %v554 = vand.u32 %v57, 4294901760
    %v555 = vsub.f32 %v57, %v554
    %556 = vmatpush.msra.mxu0 %v555
    %v557 = vand.u32 %v55, 4294901760
    %v558 = vsub.f32 %v55, %v557
    %559 = vmatpush.msra.mxu0 %v558
    %v560 = vand.u32 %v53, 4294901760
    %v561 = vsub.f32 %v53, %v560
    %562 = vmatpush.msra.mxu0 %v561
    %v563 = vand.u32 %v51, 4294901760
    %v564 = vsub.f32 %v51, %v563
    %565 = vmatpush.msra.mxu0 %v564
    %v566 = vand.u32 %v49, 4294901760
    %v567 = vsub.f32 %v49, %v566
    %568 = vmatpush.msra.mxu0 %v567
    %v569 = vand.u32 %v66, 4294901760
    %v570 = vsub.f32 %v66, %v569
    %571 = vmatmul.f32.gmra.mxu0 %v570
    %v572 = vpop.f32.mrf.mxu0
    %v573 = vadd.f32 %v523, %v572
    %v574 = vand.u32 %v69, 4294901760
    %v575 = vsub.f32 %v69, %v574
    %576 = vmatmul.f32.gmra.mxu0 %v575
    %v577 = vpop.f32.mrf.mxu0
    %v578 = vadd.f32 %v527, %v577
    %v579 = vand.u32 %v72, 4294901760
    %v580 = vsub.f32 %v72, %v579
    %581 = vmatmul.f32.gmra.mxu0 %v580
    %v582 = vpop.f32.mrf.mxu0
    %v583 = vadd.f32 %v531, %v582
    %v584 = vand.u32 %v75, 4294901760
    %v585 = vsub.f32 %v75, %v584
    %586 = vmatmul.f32.gmra.mxu0 %v585
    %v587 = vpop.f32.mrf.mxu0
    %v588 = vadd.f32 %v535, %v587
    %589 = vdwg.mxu0
    %590 = vmatpush.msra.mxu0 0.0
    %591 = vmatpush.msra.mxu0 0.0
    %592 = vmatpush.msra.mxu0 0.0
    %593 = vmatpush.msra.mxu0 0.0
    %594 = vmatpush.msra.mxu0 0.0
    %595 = vmatpush.msra.mxu0 0.0
    %596 = vmatpush.msra.mxu0 0.0
    %597 = vmatpush.msra.mxu0 0.0
    %v598 = vand.u32 %v63, 4294901760
    %599 = vmatpush.msra.mxu0 %v598
    %v600 = vand.u32 %v61, 4294901760
    %601 = vmatpush.msra.mxu0 %v600
    %v602 = vand.u32 %v59, 4294901760
    %603 = vmatpush.msra.mxu0 %v602
    %v604 = vand.u32 %v57, 4294901760
    %605 = vmatpush.msra.mxu0 %v604
    %v606 = vand.u32 %v55, 4294901760
    %607 = vmatpush.msra.mxu0 %v606
    %v608 = vand.u32 %v53, 4294901760
    %609 = vmatpush.msra.mxu0 %v608
    %v610 = vand.u32 %v51, 4294901760
    %611 = vmatpush.msra.mxu0 %v610
    %v612 = vand.u32 %v49, 4294901760
    %613 = vmatpush.msra.mxu0 %v612
    %v614 = vand.u32 %v66, 4294901760
    %v615 = vsub.f32 %v66, %v614
    %v616 = vand.u32 %v615, 4294901760
    %617 = vmatmul.f32.gmra.mxu0 %v616
    %v618 = vpop.f32.mrf.mxu0
    %v619 = vadd.f32 %v573, %v618
    %v620 = vand.u32 %v69, 4294901760
    %v621 = vsub.f32 %v69, %v620
    %v622 = vand.u32 %v621, 4294901760
    %623 = vmatmul.f32.gmra.mxu0 %v622
    %v624 = vpop.f32.mrf.mxu0
    %v625 = vadd.f32 %v578, %v624
    %v626 = vand.u32 %v72, 4294901760
    %v627 = vsub.f32 %v72, %v626
    %v628 = vand.u32 %v627, 4294901760
    %629 = vmatmul.f32.gmra.mxu0 %v628
    %v630 = vpop.f32.mrf.mxu0
    %v631 = vadd.f32 %v583, %v630
    %v632 = vand.u32 %v75, 4294901760
    %v633 = vsub.f32 %v75, %v632
    %v634 = vand.u32 %v633, 4294901760
    %635 = vmatmul.f32.gmra.mxu0 %v634
    %v636 = vpop.f32.mrf.mxu0
    %v637 = vadd.f32 %v588, %v636
    %638 = vdwg.mxu0
    %639 = vmatpush.msra.mxu0 0.0
    %640 = vmatpush.msra.mxu0 0.0
    %641 = vmatpush.msra.mxu0 0.0
    %642 = vmatpush.msra.mxu0 0.0
    %643 = vmatpush.msra.mxu0 0.0
    %644 = vmatpush.msra.mxu0 0.0
    %645 = vmatpush.msra.mxu0 0.0
    %646 = vmatpush.msra.mxu0 0.0
    %v647 = vand.u32 %v63, 4294901760
    %v648 = vsub.f32 %v63, %v647
    %v649 = vand.u32 %v648, 4294901760
    %650 = vmatpush.msra.mxu0 %v649
    %v651 = vand.u32 %v61, 4294901760
    %v652 = vsub.f32 %v61, %v651
    %v653 = vand.u32 %v652, 4294901760
    %654 = vmatpush.msra.mxu0 %v653
    %v655 = vand.u32 %v59, 4294901760
    %v656 = vsub.f32 %v59, %v655
    %v657 = vand.u32 %v656, 4294901760
    %658 = vmatpush.msra.mxu0 %v657
    %v659 = vand.u32 %v57, 4294901760
    %v660 = vsub.f32 %v57, %v659
    %v661 = vand.u32 %v660, 4294901760
    %662 = vmatpush.msra.mxu0 %v661
    %v663 = vand.u32 %v55, 4294901760
    %v664 = vsub.f32 %v55, %v663
    %v665 = vand.u32 %v664, 4294901760
    %666 = vmatpush.msra.mxu0 %v665
    %v667 = vand.u32 %v53, 4294901760
    %v668 = vsub.f32 %v53, %v667
    %v669 = vand.u32 %v668, 4294901760
    %670 = vmatpush.msra.mxu0 %v669
    %v671 = vand.u32 %v51, 4294901760
    %v672 = vsub.f32 %v51, %v671
    %v673 = vand.u32 %v672, 4294901760
    %674 = vmatpush.msra.mxu0 %v673
    %v675 = vand.u32 %v49, 4294901760
    %v676 = vsub.f32 %v49, %v675
    %v677 = vand.u32 %v676, 4294901760
    %678 = vmatpush.msra.mxu0 %v677
    %v679 = vand.u32 %v66, 4294901760
    %680 = vmatmul.f32.gmra.mxu0 %v679
    %v681 = vpop.f32.mrf.mxu0
    %v682 = vadd.f32 %v619, %v681
    %v683 = vand.u32 %v69, 4294901760
    %684 = vmatmul.f32.gmra.mxu0 %v683
    %v685 = vpop.f32.mrf.mxu0
    %v686 = vadd.f32 %v625, %v685
    %v687 = vand.u32 %v72, 4294901760
    %688 = vmatmul.f32.gmra.mxu0 %v687
    %v689 = vpop.f32.mrf.mxu0
    %v690 = vadd.f32 %v631, %v689
    %v691 = vand.u32 %v75, 4294901760
    %692 = vmatmul.f32.gmra.mxu0 %v691
    %v693 = vpop.f32.mrf.mxu0
    %v694 = vadd.f32 %v637, %v693
    %695 = vdwg.mxu0
    %696 = vmatpush.msra.mxu0 0.0
    %697 = vmatpush.msra.mxu0 0.0
    %698 = vmatpush.msra.mxu0 0.0
    %699 = vmatpush.msra.mxu0 0.0
    %700 = vmatpush.msra.mxu0 0.0
    %701 = vmatpush.msra.mxu0 0.0
    %702 = vmatpush.msra.mxu0 0.0
    %703 = vmatpush.msra.mxu0 0.0
    %v704 = vand.u32 %v63, 4294901760
    %705 = vmatpush.msra.mxu0 %v704
    %v706 = vand.u32 %v61, 4294901760
    %707 = vmatpush.msra.mxu0 %v706
    %v708 = vand.u32 %v59, 4294901760
    %709 = vmatpush.msra.mxu0 %v708
    %v710 = vand.u32 %v57, 4294901760
    %711 = vmatpush.msra.mxu0 %v710
    %v712 = vand.u32 %v55, 4294901760
    %713 = vmatpush.msra.mxu0 %v712
    %v714 = vand.u32 %v53, 4294901760
    %715 = vmatpush.msra.mxu0 %v714
    %v716 = vand.u32 %v51, 4294901760
    %717 = vmatpush.msra.mxu0 %v716
    %v718 = vand.u32 %v49, 4294901760
    %719 = vmatpush.msra.mxu0 %v718
    %v720 = vand.u32 %v66, 4294901760
    %721 = vmatmul.f32.gmra.mxu0 %v720
    %v722 = vpop.f32.mrf.mxu0
    %v723 = vadd.f32 %v682, %v722
    %v724 = vand.u32 %v69, 4294901760
    %725 = vmatmul.f32.gmra.mxu0 %v724
    %v726 = vpop.f32.mrf.mxu0
    %v727 = vadd.f32 %v686, %v726
    %v728 = vand.u32 %v72, 4294901760
    %729 = vmatmul.f32.gmra.mxu0 %v728
    %v730 = vpop.f32.mrf.mxu0
    %v731 = vadd.f32 %v690, %v730
    %v732 = vand.u32 %v75, 4294901760
    %733 = vmatmul.f32.gmra.mxu0 %v732
    %v734 = vpop.f32.mrf.mxu0
    %v735 = vadd.f32 %v694, %v734
    %736 = vdwg.mxu0
    %737 = vst [vmem:[#allocation7] sm:$0xff] %v393
    %738 = vst [vmem:[#allocation7 + $0x8] sm:$0xff] %v723
    %739 = vst [vmem:[#allocation7 + $0x10] sm:$0xff] %v397
    %740 = vst [vmem:[#allocation7 + $0x18] sm:$0xff] %v727
    %741 = vst [vmem:[#allocation7 + $0x20] sm:$0xff] %v401
    %742 = vst [vmem:[#allocation7 + $0x28] sm:$0xff] %v731
    %743 = vst [vmem:[#allocation7 + $0x30] sm:$0xff] %v405
    %744 = vst [vmem:[#allocation7 + $0x38] sm:$0xff] %v735
    // Predicated region
    $region18: #{tpu_custom_call.1} parent=1 // pred_check
      _
    $region19: #{tpu_custom_call.1} parent=1 // pred_check_branch
      %746 = sbr.rel (0) target = $region21
    $region20: #{tpu_custom_call.1} parent=1 // pred_region
      %748 = vsyncadd [#allocation4], 0
      %s749 = sshll.u32 [#allocation7], 4
      %s750 = int_to_ptr.vmem [resolvable:$true] %s749
      %s751 = sshll.u32 %s2, 4
      %s752 = int_to_ptr.hbm [resolvable:$true] %s751
      %757 = dma.vmem_to_hbm [thread:$0]  %s750, 1024, %s752, [#allocation4], 256, 256, 16
    $region21: #{tpu_custom_call.1} parent=1 // pred_fallthru
      _
    // Predicated region
    $region22: #{tpu_custom_call.1} parent=1 // pred_check
      _
    $region23: #{tpu_custom_call.1} parent=1 // pred_check_branch
      %759 = sbr.rel (0) target = $region25
    $region24: #{tpu_custom_call.1} parent=1 // pred_region
      %761 = dma.done [#allocation4], 1024
    $region25: #{tpu_custom_call.1} parent=1 // pred_fallthru
      _
    %762 = vsyncpa [#allocation3], 1
    %763 = vsyncpa [#allocation6], 1
    %764 = vsyncpa [#allocation4], 1

</llo_original>
